<compile_context>
chip_gen: v5e
topology: v5e:2x2
jax: 0.10.0
libtpu: 0.0.40
codegen_flags: <defaults>
</compile_context>

<pallas_src>
import functools

import jax
import jax.numpy as jnp
from jax.experimental import pallas as pl
from jax.experimental.pallas import tpu as pltpu


def _round_up(x, m):
    return ((x + m - 1) // m) * m


def _vmem_capacity_bytes():
    """Physical VMEM per TensorCore; conservative fallback if query fails."""
    try:
        info = pltpu.get_tpu_info()
        v = getattr(info, "vmem_capacity_bytes", None)
        if v:
            return int(v)
    except Exception:
        pass
    return 64 << 20  # v7x per-core VMEM (smallest of the targets)


def _resolve_num_cores():
    """TensorCores per chip; 1 on v5e/v6e, 2 on v7x. Fallback: 1."""
    try:
        info = pltpu.get_tpu_info()
        for attr in ("num_cores", "core_count", "num_tensorcores",
                     "tensor_core_count"):
            v = getattr(info, attr, None)
            if v:
                return max(1, int(v))
    except Exception:
        pass
    try:
        if "v7" in jax.devices()[0].device_kind.lower():
            return 2
    except Exception:
        pass
    return 1


def _xent_kernel(y_ref, yp_ref, o_ref, *, B, C, tile_b, tile_c,
                 num_b_per_core, mask_rows, mask_cols):
    p = pl.program_id(0)   # core ("parallel") axis
    i = pl.program_id(1)   # batch-tile axis (reduction)
    j = pl.program_id(2)   # class-tile axis (reduction)

    # The per-core output block is revisited across (i, j): it is the
    # accumulator. Zero it at the start of this core's reduction.
    @pl.when((i == 0) & (j == 0))
    def _():
        o_ref[...] = jnp.zeros((8, tile_c), jnp.float32)

    n_slabs = tile_b // 8
    row_base = (p * num_b_per_core + i) * tile_b

    def fold(masked):
        # Hoisted mask pieces: one (1, tile_c) and one (8, 1) iota; the full
        # (8, tile_c) mask only ever exists as the broadcast of two compares.
        col_ok = None
        rows8 = None
        if masked and mask_cols:
            cols = jax.lax.broadcasted_iota(jnp.int32, (1, tile_c), 1)
            col_ok = (j * tile_c + cols) < C
        if masked and mask_rows:
            rows8 = jax.lax.broadcasted_iota(jnp.int32, (8, 1), 0)

        def slab(s, carry):
            start = pl.multiple_of(s * 8, 8)
            ys = y_ref[pl.ds(start, 8), :].astype(jnp.float32)
            ps = yp_ref[pl.ds(start, 8), :].astype(jnp.float32)
            contrib = ys * jnp.log(ps + 1e-20)          # (8, tile_c) VPU+EUP
            if masked:
                mask = col_ok
                if mask_rows:
                    row_ok = (row_base + s * 8 + rows8) < B
                    mask = row_ok if mask is None else (row_ok & mask)
                # Single select on the product; NaN/-inf from padded garbage
                # in the unselected branch is discarded.
                contrib = jnp.where(mask, contrib, 0.0)
            # Fold straight onto the lane-dense (8, tile_c) accumulator block:
            # the (tile_b, tile_c) f32 contrib is never materialized.
            o_ref[...] += contrib
            return carry

        jax.lax.fori_loop(0, n_slabs, slab, 0)

    if mask_rows or mask_cols:
        # Only boundary tiles pay the masking cost.
        needs_mask = None
        if mask_rows:
            needs_mask = row_base + tile_b > B
        if mask_cols:
            col_tail = j == pl.num_programs(2) - 1
            needs_mask = col_tail if needs_mask is None else (needs_mask | col_tail)

        @pl.when(needs_mask)
        def _():
            fold(True)

        @pl.when(jnp.logical_not(needs_mask))
        def _():
            fold(False)
    else:
        fold(False)


def loss_cross_entropy(y, y_prim, *, num_cores=None):
    assert y.shape == y_prim.shape
    if y.ndim == 1:
        y, y_prim = y.reshape(1, -1), y_prim.reshape(1, -1)
    elif y.ndim > 2:  # full-array sum -> flattening leading dims is equivalent
        y = y.reshape(-1, y.shape[-1])
        y_prim = y_prim.reshape(-1, y_prim.shape[-1])
    B, C = y.shape
    itemsize = max(jnp.dtype(y.dtype).itemsize, jnp.dtype(y_prim.dtype).itemsize)

    vmem_cap = _vmem_capacity_bytes()
    if num_cores is None:
        num_cores = _resolve_num_cores()

    # ---- tile selection from the VMEM budget -------------------------------
    # Lane tile: full padded class dim up to 2048 lanes; bigger C gets column
    # tiles on a second reduction axis.
    c_pad = _round_up(C, 128)
    tile_c = min(c_pad, 2048)
    # ~8 MiB input blocks on 128 MiB-VMEM chips (v5e/v6e), ~4 MiB on v7x:
    # 2 inputs x 2 pipeline buffers stays well inside physical VMEM.
    target_block_bytes = (8 << 20) if vmem_cap >= (100 << 20) else (4 << 20)
    rows = max(8, (target_block_bytes // (tile_c * itemsize)) // 8 * 8)
    b_pad = _round_up(B, 8)
    tile_b = min(rows, b_pad)          # multiple of 8 by construction

    num_b = pl.cdiv(b_pad, tile_b)
    num_c = pl.cdiv(c_pad, tile_c)
    num_cores = max(1, min(int(num_cores), num_b))
    num_b_per_core = pl.cdiv(num_b, num_cores)

    mask_rows = num_cores * num_b_per_core * tile_b > B
    mask_cols = num_c * tile_c > C

    kernel = functools.partial(
        _xent_kernel, B=B, C=C, tile_b=tile_b, tile_c=tile_c,
        num_b_per_core=num_b_per_core,
        mask_rows=mask_rows, mask_cols=mask_cols)

    if num_cores * num_b_per_core > num_b:
        # Redundant tiles (uneven core split) re-read a valid block; they are
        # fully row-masked in the kernel, so nothing is double-counted.
        def in_map(p, i, j):
            return (jnp.minimum(p * num_b_per_core + i, num_b - 1), j)
    else:
        def in_map(p, i, j):
            return (p * num_b_per_core + i, j)

    block_bytes = tile_b * tile_c * itemsize
    # 2 inputs x 2 buffers + headroom for the output block / slab temporaries,
    # capped below the chip's physical VMEM (64 MiB on v7x, 128 MiB v5e/v6e).
    vmem_limit = int(min(max(16 << 20, 4 * block_bytes + (6 << 20)),
                         max(32 << 20, vmem_cap - (8 << 20))))

    partials = pl.pallas_call(
        kernel,
        out_shape=jax.ShapeDtypeStruct((num_cores * 8, tile_c), jnp.float32),
        grid_spec=pltpu.PrefetchScalarGridSpec(
            num_scalar_prefetch=0,
            grid=(num_cores, num_b_per_core, num_c),
            in_specs=[
                pl.BlockSpec((tile_b, tile_c), in_map),
                pl.BlockSpec((tile_b, tile_c), in_map),
            ],
            out_specs=pl.BlockSpec((8, tile_c), lambda p, i, j: (p, 0)),
        ),
        compiler_params=pltpu.CompilerParams(
            dimension_semantics=("parallel", "arbitrary", "arbitrary"),
            vmem_limit_bytes=vmem_limit,
        ),
    )(y, y_prim)

    # Tiny final reduction over (num_cores*8, tile_c) partials + negation.
    return -jnp.sum(partials)


if __name__ == "__main__":
    key = jax.random.PRNGKey(0)
    k1, k2 = jax.random.split(key)

    B, C = 16, 128  # small TPU-friendly shapes (batch, num_classes)

    # y: one-hot targets; y_prim: softmax "predictions" (probabilities).
    labels = jax.random.randint(k1, (B,), 0, C)
    y = jax.nn.one_hot(labels, C, dtype=jnp.float32)
    logits = jax.random.normal(k2, (B, C), dtype=jnp.float32)
    y_prim = jax.nn.softmax(logits, axis=-1)

    loss = loss_cross_entropy(y, y_prim)
    jax.block_until_ready(loss)

    # Reference check against plain JAX (mirrors the PyTorch forward).
    ref = -jnp.sum(y * jnp.log(y_prim + 1e-20))
    assert jnp.allclose(loss, ref, rtol=1e-5, atol=1e-5), (loss, ref)

    print("KERNEL_OK")
</pallas_src>

<mosaic_0001>
module attributes {stable_mosaic.version = 11 : i64} {
  func.func @_xent_kernel(%arg0: i32, %arg1: i32, %arg2: i32, %arg3: memref<16x128xf32, #tpu.memory_space<vmem>>, %arg4: memref<16x128xf32, #tpu.memory_space<vmem>>, %arg5: memref<8x128xf32, #tpu.memory_space<vmem>>) attributes {dimension_semantics = [#tpu.dimension_semantics<parallel>, #tpu.dimension_semantics<arbitrary>, #tpu.dimension_semantics<arbitrary>], iteration_bounds = array<i64: 1, 1, 1>, scalar_prefetch = 0 : i64, scratch_operands = 0 : i64, tpu.core_type = #tpu.core_type<tc>, window_params = [{transform_indices = @transform_0, window_bounds = array<i64: 16, 128>}, {transform_indices = @transform_1, window_bounds = array<i64: 16, 128>}, {transform_indices = @transform_2, window_bounds = array<i64: 8, 128>}]} {
    %c0_i32 = arith.constant 0 : i32
    %0 = arith.cmpi eq, %arg1, %c0_i32 : i32
    %c0_i32_0 = arith.constant 0 : i32
    %1 = arith.cmpi eq, %arg2, %c0_i32_0 : i32
    %2 = arith.andi %0, %1 : i1
    %3 = arith.extui %2 : i1 to i32
    %c0_i32_1 = arith.constant 0 : i32
    %4 = arith.cmpi ne, %3, %c0_i32_1 : i32
    scf.if %4 {
      %cst = arith.constant 0.000000e+00 : f32
      %6 = vector.broadcast %cst : f32 to vector<8x128xf32>
      %c0 = arith.constant 0 : index
      %c0_4 = arith.constant 0 : index
      %7 = vector.load %arg5[%c0, %c0_4] : memref<8x128xf32, #tpu.memory_space<vmem>>, vector<8x128xf32>
      tpu.vector_store %arg5[%c0, %c0_4], %6 {strides = array<i32>} : memref<8x128xf32, #tpu.memory_space<vmem>>, vector<8x128xf32>,
    } else {
    }
    %c0_i32_2 = arith.constant 0 : i32
    %c2_i32 = arith.constant 2 : i32
    %5 = arith.addi %c0_i32_2, %c2_i32 : i32
    %c1_i32 = arith.constant 1 : i32
    scf.for %arg6 = %c0_i32_2 to %5 step %c1_i32  : i32 {
      %c8_i32 = arith.constant 8 : i32
      %6 = arith.muli %arg6, %c8_i32 : i32
      %7 = tpu.assume_multiple %6, 8 : i32
      %8 = arith.index_cast %7 : i32 to index
      %c0 = arith.constant 0 : index
      %9 = vector.load %arg3[%8, %c0] : memref<16x128xf32, #tpu.memory_space<vmem>>, vector<8x128xf32>
      %10 = arith.index_cast %7 : i32 to index
      %c0_4 = arith.constant 0 : index
      %11 = vector.load %arg4[%10, %c0_4] : memref<16x128xf32, #tpu.memory_space<vmem>>, vector<8x128xf32>
      %cst = arith.constant 9.99999968E-21 : f32
      %12 = vector.broadcast %cst : f32 to vector<8x128xf32>
      %13 = arith.addf %11, %12 : vector<8x128xf32>
      %14 = math.log %13 : vector<8x128xf32>
      %15 = arith.mulf %9, %14 : vector<8x128xf32>
      %c0_5 = arith.constant 0 : index
      %c0_6 = arith.constant 0 : index
      %16 = vector.load %arg5[%c0_5, %c0_6] : memref<8x128xf32, #tpu.memory_space<vmem>>, vector<8x128xf32>
      %17 = arith.addf %16, %15 : vector<8x128xf32>
      %c0_7 = arith.constant 0 : index
      %c0_8 = arith.constant 0 : index
      %18 = vector.load %arg5[%c0_7, %c0_8] : memref<8x128xf32, #tpu.memory_space<vmem>>, vector<8x128xf32>
      tpu.vector_store %arg5[%c0_7, %c0_8], %17 {strides = array<i32>} : memref<8x128xf32, #tpu.memory_space<vmem>>, vector<8x128xf32>,
    }
    %c2_i32_3 = arith.constant 2 : i32
    return
  }
  func.func @transform_0(%arg0: i32, %arg1: i32, %arg2: i32) -> (i32, i32) {
    %c1_i32 = arith.constant 1 : i32
    %0 = arith.muli %arg0, %c1_i32 : i32
    %1 = arith.addi %0, %arg1 : i32
    %c0_i32 = arith.constant 0 : i32
    return %1, %arg2 : i32, i32
  }
  func.func @transform_1(%arg0: i32, %arg1: i32, %arg2: i32) -> (i32, i32) {
    %c1_i32 = arith.constant 1 : i32
    %0 = arith.muli %arg0, %c1_i32 : i32
    %1 = arith.addi %0, %arg1 : i32
    %c0_i32 = arith.constant 0 : i32
    return %1, %arg2 : i32, i32
  }
  func.func @transform_2(%arg0: i32, %arg1: i32, %arg2: i32) -> (i32, i32) {
    %c0_i32 = arith.constant 0 : i32
    %c0_i32_0 = arith.constant 0 : i32
    return %arg0, %c0_i32 : i32, i32
  }
}

</mosaic_0001>

<llo_original>
// kernel: tpu_custom_call.1
$region0: #{tpu_custom_call.1}
  #allocation0 [shape = 'u32[]', space=smem, size = 0x4, offset = 0x4, fixed_abs, tag = 'smem constant byte address 0x4 - core index']
  #allocation1 [shape = 'u32[72,128]{1,0:T(1,128)}', space=vmem, size = 0x9000, scoped, tag = 'internal scratch']
  %s0 = inlined_call_operand.hbm [shape: f32[16,128], index: 0, kind: input, shape index: {}]
  %s1 = inlined_call_operand.hbm [shape: f32[16,128], index: 1, kind: input, shape index: {}]
  %s2 = inlined_call_operand.hbm [shape: f32[8,128], index: 2, kind: output, shape index: {}]
  %s3 = sld [smem:[#allocation0]]
  $region37: #{tpu_custom_call.1} parent=0
    _
  %s5 = ssub.s32 1, %s3
  %s6 = scalar_select 0, %s5, %s3
  $region1: #{tpu_custom_call.1} parent=0
    #allocation2 [shape = 'u8[8192]{0}', space=vmem, size = 0x2000, scoped, tag = 'input window, operand 0, single buffered']
    #allocation3 [shape = 's32[1]{0}', space=sflag, size = 0x4, scoped, tag = 'scoped memory for tpu_custom_call.1']
    #allocation4 [shape = 's32[1]{0}', space=sflag, size = 0x4, scoped, tag = 'scoped memory for tpu_custom_call.1']
    #allocation5 [shape = 'u8[8192]{0}', space=vmem, size = 0x2000, scoped, tag = 'input window, operand 1, single buffered']
    #allocation6 [shape = 's32[1]{0}', space=sflag, size = 0x4, scoped, tag = 'scoped memory for tpu_custom_call.1']
    #allocation7 [shape = 'u8[4096]{0}', space=vmem, size = 0x1000, scoped, tag = 'output window, operand 0, single buffered']
    %7 = vsyncpa [#allocation3], 0
    %8 = vsyncpa [#allocation6], 0
    %9 = vsyncpa [#allocation4], 0
    // Predicated region
    $region2: #{tpu_custom_call.1} parent=1 // pred_check
      _
    $region3: #{tpu_custom_call.1} parent=1 // pred_check_branch
      %11 = sbr.rel (0) target = $region5
    $region4: #{tpu_custom_call.1} parent=1 // pred_region
      %s12 = sadd.s32 0, 0
      %s13 = smul.u32 2, %s12
      %15 = vsyncadd [#allocation3], 0
      %s16 = smul.addr %s13, 8
      %s17 = scalar_lea.hbm %s0, %s16
      %s18 = sshll.u32 %s17, 4
      %s19 = int_to_ptr.hbm [resolvable:$true] %s18
      %s20 = sshll.u32 [#allocation2], 4
      %s21 = int_to_ptr.vmem [resolvable:$true] %s20
      %26 = dma.hbm_to_vmem [thread:$0]  %s19, 256, %s21, [#allocation3], 128, 128, 8
    $region5: #{tpu_custom_call.1} parent=1 // pred_fallthru
      _
    // Predicated region
    $region6: #{tpu_custom_call.1} parent=1 // pred_check
      _
    $region7: #{tpu_custom_call.1} parent=1 // pred_check_branch
      %28 = sbr.rel (0) target = $region9
    $region8: #{tpu_custom_call.1} parent=1 // pred_region
      %s29 = sadd.s32 0, 0
      %s30 = smul.u32 2, %s29
      %32 = vsyncadd [#allocation6], 0
      %s33 = smul.addr %s30, 8
      %s34 = scalar_lea.hbm %s1, %s33
      %s35 = sshll.u32 %s34, 4
      %s36 = int_to_ptr.hbm [resolvable:$true] %s35
      %s37 = sshll.u32 [#allocation5], 4
      %s38 = int_to_ptr.vmem [resolvable:$true] %s37
      %43 = dma.hbm_to_vmem [thread:$0]  %s36, 256, %s38, [#allocation6], 128, 128, 8
    $region9: #{tpu_custom_call.1} parent=1 // pred_fallthru
      _
    // Predicated region
    $region10: #{tpu_custom_call.1} parent=1 // pred_check
      _
    $region11: #{tpu_custom_call.1} parent=1 // pred_check_branch
      %45 = sbr.rel (0) target = $region13
    $region12: #{tpu_custom_call.1} parent=1 // pred_region
      %47 = dma.done [#allocation3], 256
    $region13: #{tpu_custom_call.1} parent=1 // pred_fallthru
      _
    // Predicated region
    $region14: #{tpu_custom_call.1} parent=1 // pred_check
      _
    $region15: #{tpu_custom_call.1} parent=1 // pred_check_branch
      %49 = sbr.rel (0) target = $region17
    $region16: #{tpu_custom_call.1} parent=1 // pred_region
      %51 = dma.done [#allocation6], 256
    $region17: #{tpu_custom_call.1} parent=1 // pred_fallthru
      _
    %s52 = sadd.s32 0, 0
    %s53 = smul.u32 2, %s52
    %s54 = sadd.s32 0, 0
    %s55 = smul.u32 2, %s54
    %p56 = scmp.eq.s32.totalorder 0, 0
    %p57 = scmp.eq.s32.totalorder 0, 0
    %p58 = pnand %p56, %p57
    %p59 = pneg %p58
    // Predicated region
    $region18: #{tpu_custom_call.1} parent=1 // pred_check
      _
    $region19: #{tpu_custom_call.1} parent=1 // pred_check_branch
      %61 = sbr.rel (%p58) target = $region21
    $region20: #{tpu_custom_call.1} parent=1 // pred_region
      %62 = vst [vmem:[#allocation7] sm:$0xff] 0.0
    $region21: #{tpu_custom_call.1} parent=1 // pred_fallthru
      _
    loop: start=0, step=1, limit=2
    $region22: #{tpu_custom_call.1} parent=1 // loop_pre_header
      _
    $region23: #{tpu_custom_call.1} parent=1 // loop_header
      %s64 = sphi 0, %s68
      %p65 = scmp.ge.s32.totalorder %s64, 2
    $region24: #{tpu_custom_call.1} parent=1 // loop_header_branch
      %67 = sbr.rel (%p65) target = $region28
    $region25: #{tpu_custom_call.1} parent=1 // loop_body
      %s69 = smul.u32 %s64, 8
      %s70 = scalar_lea.vmem [#allocation2], %s69
      %v71 = vld [vmem:[%s70] sm:$0xff]
      %s72 = scalar_lea.vmem [#allocation5], %s69
      %v73 = vld [vmem:[%s72] sm:$0xff]
      %v74 = vadd.f32 %v73, 1e-20
      %v75 = vlog2.pop %v74
      %v76 = vmul.f32 %v75, 0.6931472
      %v77 = vmul.f32 %v71, %v76
      %v78 = vld [vmem:[#allocation7] sm:$0xff]
      %v79 = vadd.f32 %v78, %v77
      %80 = vst [vmem:[#allocation7] sm:$0xff] %v79
    $region26: #{tpu_custom_call.1} parent=1 // loop_footer
      %s68 = sadd.s32 1, %s64
    $region27: #{tpu_custom_call.1} parent=1 // loop_footer_branch
      %63 = sbr.rel target = $region23
    $region28: #{tpu_custom_call.1} parent=1 // loop_exit
      _
    // Predicated region
    $region29: #{tpu_custom_call.1} parent=1 // pred_check
      _
    $region30: #{tpu_custom_call.1} parent=1 // pred_check_branch
      %82 = sbr.rel (0) target = $region32
    $region31: #{tpu_custom_call.1} parent=1 // pred_region
      %84 = vsyncadd [#allocation4], 0
      %s86 = sshll.u32 [#allocation7], 4
      %s87 = int_to_ptr.vmem [resolvable:$true] %s86
      %s88 = sshll.u32 %s2, 4
      %s89 = int_to_ptr.hbm [resolvable:$true] %s88
      %91 = dma.vmem_to_hbm [thread:$0]  %s87, 128, %s89, [#allocation4]
    $region32: #{tpu_custom_call.1} parent=1 // pred_fallthru
      _
    // Predicated region
    $region33: #{tpu_custom_call.1} parent=1 // pred_check
      _
    $region34: #{tpu_custom_call.1} parent=1 // pred_check_branch
      %93 = sbr.rel (0) target = $region36
    $region35: #{tpu_custom_call.1} parent=1 // pred_region
      %95 = dma.done [#allocation4], 128
    $region36: #{tpu_custom_call.1} parent=1 // pred_fallthru
      _
    %96 = vsyncpa [#allocation3], 1
    %97 = vsyncpa [#allocation6], 1
    %98 = vsyncpa [#allocation4], 1

</llo_original>
